<compile_context>
chip_gen: v7x
topology: tpu7x:2x2x1
jax: 0.10.0
libtpu: 0.0.40
codegen_flags: <defaults>
</compile_context>

<pallas_src>
import math

import jax
import jax.numpy as jnp
from jax import lax
from jax.experimental import pallas as pl
from jax.experimental.pallas import tpu as pltpu


def _emb_dot_kernel(c1_ref, c2_ref, emb_ref, o_ref, e1_sc, e2_sc):
    """One grid step = one batch tile of TB elements.

    c1_ref, c2_ref : SMEM scalar-prefetch refs, shape (B_padded,) int32
    emb_ref        : embedding table resident in VMEM, (champ_num, emb_num)
    o_ref          : (1, TB) lane-dense output block for this tile
    e1_sc, e2_sc   : (TB, emb_num) VMEM gather slabs
    """
    t = pl.program_id(0)
    tb = o_ref.shape[1]          # static batch-tile size
    base = t * tb

    # Gather TB rows for each index set into VMEM slabs.  Unrolled so the LLO
    # scheduler can co-issue the dynamic sublane loads/stores.
    def gather(i, carry):
        e1_sc[i, :] = emb_ref[c1_ref[base + i], :]
        e2_sc[i, :] = emb_ref[c2_ref[base + i], :]
        return carry

    lax.fori_loop(0, tb, gather, 0, unroll=(tb <= 64))

    # VPU multiply + lane reduction in f32 (keeps v5e happy for bf16 tables).
    e1 = e1_sc[...].astype(jnp.float32)
    e2 = e2_sc[...].astype(jnp.float32)
    dots = jnp.sum(e1 * e2, axis=-1)          # (TB,)
    o_ref[...] = dots[None, :]                # (1, TB) lane-dense store


def embedding_dot(emb_table: jax.Array, champ1: jax.Array, champ2: jax.Array,
                  *, tile_b: int | None = None) -> jax.Array:
    """Pallas equivalent of Model.forward. Returns (B, 1, 1) float32."""
    champ_num, emb_num = emb_table.shape
    (B,) = champ1.shape

    # Batch tile: one tile for small batches, 512-wide tiles for large ones.
    if tile_b is None:
        tile_b = B if B <= 512 else 512
    num_tiles = math.ceil(B / tile_b)
    b_padded = num_tiles * tile_b

    c1 = champ1.astype(jnp.int32)
    c2 = champ2.astype(jnp.int32)
    if b_padded != B:
        pad = b_padded - B
        c1 = jnp.pad(c1, (0, pad))   # index 0 is always valid; padded results dropped
        c2 = jnp.pad(c2, (0, pad))

    # Explicit VMEM budget: table (double-buffered block) + 2 gather slabs + output.
    esize = jnp.dtype(emb_table.dtype).itemsize
    table_bytes = champ_num * emb_num * esize
    slab_bytes = 2 * tile_b * emb_num * esize
    out_bytes = 2 * tile_b * 4
    needed = 2 * table_bytes + slab_bytes + out_bytes + (1 << 20)
    vmem_limit = int(min(max(needed, 16 * 1024 * 1024), 128 * 1024 * 1024))
    # TODO(synk): for tables too large to sit resident in VMEM (e.g. >~24 MiB on
    # v7x), switch the table to memory_space=pl.ANY and DMA only the 2*B rows.

    grid_spec = pltpu.PrefetchScalarGridSpec(
        num_scalar_prefetch=2,           # champ1, champ2 land in SMEM before the grid runs
        grid=(num_tiles,),
        in_specs=[
            # Full embedding table, same block every step (no re-DMA across tiles).
            pl.BlockSpec((champ_num, emb_num), lambda t, c1, c2: (0, 0)),
        ],
        out_specs=pl.BlockSpec((1, tile_b), lambda t, c1, c2: (t, 0)),
        scratch_shapes=[
            pltpu.VMEM((tile_b, emb_num), emb_table.dtype),
            pltpu.VMEM((tile_b, emb_num), emb_table.dtype),
        ],
    )

    out2d = pl.pallas_call(
        _emb_dot_kernel,
        out_shape=jax.ShapeDtypeStruct((num_tiles, tile_b), jnp.float32),
        grid_spec=grid_spec,
        compiler_params=pltpu.CompilerParams(
            dimension_semantics=("parallel",),   # independent batch tiles (v7x 2-TC)
            vmem_limit_bytes=vmem_limit,
        ),
    )(c1, c2, emb_table)

    # Free layout plumbing back to the torch.bmm output shape.
    return out2d.reshape(-1)[:B].reshape(B, 1, 1)


if __name__ == "__main__":
    # Small, TPU-friendly sizes.
    champ_num = 64     # vocabulary size of the embedding
    emb_num = 128      # embedding dim (lane-aligned)
    B = 8              # batch size

    key = jax.random.PRNGKey(0)
    k_emb, k_c1, k_c2 = jax.random.split(key, 3)

    # Deterministic parameter init (nn.Embedding weight ~ N(0, 1)).
    emb_table = jax.random.normal(k_emb, (champ_num, emb_num), dtype=jnp.float32)

    champ1 = jax.random.randint(k_c1, (B,), 0, champ_num, dtype=jnp.int32)
    champ2 = jax.random.randint(k_c2, (B,), 0, champ_num, dtype=jnp.int32)

    out = embedding_dot(emb_table, champ1, champ2)
    out = jax.block_until_ready(out)

    # Pure-JAX reference check (same semantics as torch.bmm of the unsqueezed embeddings).
    e1 = emb_table[champ1]                          # (B, E)
    e2 = emb_table[champ2]                          # (B, E)
    ref = jnp.sum(e1 * e2, axis=-1)[:, None, None]  # (B, 1, 1)

    assert out.shape == (B, 1, 1), out.shape
    assert jnp.allclose(out, ref, atol=1e-4, rtol=1e-4), (out.ravel(), ref.ravel())

    print("KERNEL_OK")
</pallas_src>

<mosaic_0001>
module attributes {stable_mosaic.version = 11 : i64} {
  func.func @_emb_dot_kernel(%arg0: i32, %arg1: memref<8xi32, #tpu.memory_space<smem>>, %arg2: memref<8xi32, #tpu.memory_space<smem>>, %arg3: memref<64x128xf32, #tpu.memory_space<vmem>>, %arg4: memref<1x8xf32, #tpu.memory_space<vmem>>, %arg5: memref<8x128xf32, #tpu.memory_space<vmem>>, %arg6: memref<8x128xf32, #tpu.memory_space<vmem>>) attributes {dimension_semantics = [#tpu.dimension_semantics<parallel>], iteration_bounds = array<i64: 1>, scalar_prefetch = 2 : i64, scratch_operands = 2 : i64, tpu.core_type = #tpu.core_type<tc>, window_params = [{pipeline_mode = #tpu.pipeline_mode<synchronous>, transform_indices = @transform_0, window_bounds = array<i64: 64, 128>}, {transform_indices = @transform_1, window_bounds = array<i64: 1, 8>}]} {
    %c8_i32 = arith.constant 8 : i32
    %0 = arith.muli %arg0, %c8_i32 : i32
    %c0_i32 = arith.constant 0 : i32
    %1 = arith.addi %0, %c0_i32 : i32
    %2 = arith.index_cast %1 : i32 to index
    %3 = memref.load %arg1[%2] : memref<8xi32, #tpu.memory_space<smem>>
    %4 = arith.index_cast %3 : i32 to index
    %c0 = arith.constant 0 : index
    %5 = vector.load %arg3[%4, %c0] : memref<64x128xf32, #tpu.memory_space<vmem>>, vector<1x128xf32>
    %6 = vector.shape_cast %5 : vector<1x128xf32> to vector<128xf32>
    %7 = arith.index_cast %c0_i32 : i32 to index
    %c0_0 = arith.constant 0 : index
    %8 = vector.load %arg5[%7, %c0_0] : memref<8x128xf32, #tpu.memory_space<vmem>>, vector<1x128xf32>
    %9 = vector.shape_cast %8 : vector<1x128xf32> to vector<128xf32>
    %10 = vector.shape_cast %6 : vector<128xf32> to vector<1x128xf32>
    tpu.vector_store %arg5[%7, %c0_0], %10 {strides = array<i32>} : memref<8x128xf32, #tpu.memory_space<vmem>>, vector<1x128xf32>,
    %11 = arith.addi %0, %c0_i32 : i32
    %12 = arith.index_cast %11 : i32 to index
    %13 = memref.load %arg2[%12] : memref<8xi32, #tpu.memory_space<smem>>
    %14 = arith.index_cast %13 : i32 to index
    %c0_1 = arith.constant 0 : index
    %15 = vector.load %arg3[%14, %c0_1] : memref<64x128xf32, #tpu.memory_space<vmem>>, vector<1x128xf32>
    %16 = vector.shape_cast %15 : vector<1x128xf32> to vector<128xf32>
    %17 = arith.index_cast %c0_i32 : i32 to index
    %c0_2 = arith.constant 0 : index
    %18 = vector.load %arg6[%17, %c0_2] : memref<8x128xf32, #tpu.memory_space<vmem>>, vector<1x128xf32>
    %19 = vector.shape_cast %18 : vector<1x128xf32> to vector<128xf32>
    %20 = vector.shape_cast %16 : vector<128xf32> to vector<1x128xf32>
    tpu.vector_store %arg6[%17, %c0_2], %20 {strides = array<i32>} : memref<8x128xf32, #tpu.memory_space<vmem>>, vector<1x128xf32>,
    %c1_i32 = arith.constant 1 : i32
    %21 = arith.addi %0, %c1_i32 : i32
    %22 = arith.index_cast %21 : i32 to index
    %23 = memref.load %arg1[%22] : memref<8xi32, #tpu.memory_space<smem>>
    %24 = arith.index_cast %23 : i32 to index
    %c0_3 = arith.constant 0 : index
    %25 = vector.load %arg3[%24, %c0_3] : memref<64x128xf32, #tpu.memory_space<vmem>>, vector<1x128xf32>
    %26 = vector.shape_cast %25 : vector<1x128xf32> to vector<128xf32>
    %27 = arith.index_cast %c1_i32 : i32 to index
    %c0_4 = arith.constant 0 : index
    %28 = vector.load %arg5[%27, %c0_4] : memref<8x128xf32, #tpu.memory_space<vmem>>, vector<1x128xf32>
    %29 = vector.shape_cast %28 : vector<1x128xf32> to vector<128xf32>
    %30 = vector.shape_cast %26 : vector<128xf32> to vector<1x128xf32>
    tpu.vector_store %arg5[%27, %c0_4], %30 {strides = array<i32>} : memref<8x128xf32, #tpu.memory_space<vmem>>, vector<1x128xf32>,
    %31 = arith.addi %0, %c1_i32 : i32
    %32 = arith.index_cast %31 : i32 to index
    %33 = memref.load %arg2[%32] : memref<8xi32, #tpu.memory_space<smem>>
    %34 = arith.index_cast %33 : i32 to index
    %c0_5 = arith.constant 0 : index
    %35 = vector.load %arg3[%34, %c0_5] : memref<64x128xf32, #tpu.memory_space<vmem>>, vector<1x128xf32>
    %36 = vector.shape_cast %35 : vector<1x128xf32> to vector<128xf32>
    %37 = arith.index_cast %c1_i32 : i32 to index
    %c0_6 = arith.constant 0 : index
    %38 = vector.load %arg6[%37, %c0_6] : memref<8x128xf32, #tpu.memory_space<vmem>>, vector<1x128xf32>
    %39 = vector.shape_cast %38 : vector<1x128xf32> to vector<128xf32>
    %40 = vector.shape_cast %36 : vector<128xf32> to vector<1x128xf32>
    tpu.vector_store %arg6[%37, %c0_6], %40 {strides = array<i32>} : memref<8x128xf32, #tpu.memory_space<vmem>>, vector<1x128xf32>,
    %c2_i32 = arith.constant 2 : i32
    %41 = arith.addi %0, %c2_i32 : i32
    %42 = arith.index_cast %41 : i32 to index
    %43 = memref.load %arg1[%42] : memref<8xi32, #tpu.memory_space<smem>>
    %44 = arith.index_cast %43 : i32 to index
    %c0_7 = arith.constant 0 : index
    %45 = vector.load %arg3[%44, %c0_7] : memref<64x128xf32, #tpu.memory_space<vmem>>, vector<1x128xf32>
    %46 = vector.shape_cast %45 : vector<1x128xf32> to vector<128xf32>
    %47 = arith.index_cast %c2_i32 : i32 to index
    %c0_8 = arith.constant 0 : index
    %48 = vector.load %arg5[%47, %c0_8] : memref<8x128xf32, #tpu.memory_space<vmem>>, vector<1x128xf32>
    %49 = vector.shape_cast %48 : vector<1x128xf32> to vector<128xf32>
    %50 = vector.shape_cast %46 : vector<128xf32> to vector<1x128xf32>
    tpu.vector_store %arg5[%47, %c0_8], %50 {strides = array<i32>} : memref<8x128xf32, #tpu.memory_space<vmem>>, vector<1x128xf32>,
    %51 = arith.addi %0, %c2_i32 : i32
    %52 = arith.index_cast %51 : i32 to index
    %53 = memref.load %arg2[%52] : memref<8xi32, #tpu.memory_space<smem>>
    %54 = arith.index_cast %53 : i32 to index
    %c0_9 = arith.constant 0 : index
    %55 = vector.load %arg3[%54, %c0_9] : memref<64x128xf32, #tpu.memory_space<vmem>>, vector<1x128xf32>
    %56 = vector.shape_cast %55 : vector<1x128xf32> to vector<128xf32>
    %57 = arith.index_cast %c2_i32 : i32 to index
    %c0_10 = arith.constant 0 : index
    %58 = vector.load %arg6[%57, %c0_10] : memref<8x128xf32, #tpu.memory_space<vmem>>, vector<1x128xf32>
    %59 = vector.shape_cast %58 : vector<1x128xf32> to vector<128xf32>
    %60 = vector.shape_cast %56 : vector<128xf32> to vector<1x128xf32>
    tpu.vector_store %arg6[%57, %c0_10], %60 {strides = array<i32>} : memref<8x128xf32, #tpu.memory_space<vmem>>, vector<1x128xf32>,
    %c3_i32 = arith.constant 3 : i32
    %61 = arith.addi %0, %c3_i32 : i32
    %62 = arith.index_cast %61 : i32 to index
    %63 = memref.load %arg1[%62] : memref<8xi32, #tpu.memory_space<smem>>
    %64 = arith.index_cast %63 : i32 to index
    %c0_11 = arith.constant 0 : index
    %65 = vector.load %arg3[%64, %c0_11] : memref<64x128xf32, #tpu.memory_space<vmem>>, vector<1x128xf32>
    %66 = vector.shape_cast %65 : vector<1x128xf32> to vector<128xf32>
    %67 = arith.index_cast %c3_i32 : i32 to index
    %c0_12 = arith.constant 0 : index
    %68 = vector.load %arg5[%67, %c0_12] : memref<8x128xf32, #tpu.memory_space<vmem>>, vector<1x128xf32>
    %69 = vector.shape_cast %68 : vector<1x128xf32> to vector<128xf32>
    %70 = vector.shape_cast %66 : vector<128xf32> to vector<1x128xf32>
    tpu.vector_store %arg5[%67, %c0_12], %70 {strides = array<i32>} : memref<8x128xf32, #tpu.memory_space<vmem>>, vector<1x128xf32>,
    %71 = arith.addi %0, %c3_i32 : i32
    %72 = arith.index_cast %71 : i32 to index
    %73 = memref.load %arg2[%72] : memref<8xi32, #tpu.memory_space<smem>>
    %74 = arith.index_cast %73 : i32 to index
    %c0_13 = arith.constant 0 : index
    %75 = vector.load %arg3[%74, %c0_13] : memref<64x128xf32, #tpu.memory_space<vmem>>, vector<1x128xf32>
    %76 = vector.shape_cast %75 : vector<1x128xf32> to vector<128xf32>
    %77 = arith.index_cast %c3_i32 : i32 to index
    %c0_14 = arith.constant 0 : index
    %78 = vector.load %arg6[%77, %c0_14] : memref<8x128xf32, #tpu.memory_space<vmem>>, vector<1x128xf32>
    %79 = vector.shape_cast %78 : vector<1x128xf32> to vector<128xf32>
    %80 = vector.shape_cast %76 : vector<128xf32> to vector<1x128xf32>
    tpu.vector_store %arg6[%77, %c0_14], %80 {strides = array<i32>} : memref<8x128xf32, #tpu.memory_space<vmem>>, vector<1x128xf32>,
    %c4_i32 = arith.constant 4 : i32
    %81 = arith.addi %0, %c4_i32 : i32
    %82 = arith.index_cast %81 : i32 to index
    %83 = memref.load %arg1[%82] : memref<8xi32, #tpu.memory_space<smem>>
    %84 = arith.index_cast %83 : i32 to index
    %c0_15 = arith.constant 0 : index
    %85 = vector.load %arg3[%84, %c0_15] : memref<64x128xf32, #tpu.memory_space<vmem>>, vector<1x128xf32>
    %86 = vector.shape_cast %85 : vector<1x128xf32> to vector<128xf32>
    %87 = arith.index_cast %c4_i32 : i32 to index
    %c0_16 = arith.constant 0 : index
    %88 = vector.load %arg5[%87, %c0_16] : memref<8x128xf32, #tpu.memory_space<vmem>>, vector<1x128xf32>
    %89 = vector.shape_cast %88 : vector<1x128xf32> to vector<128xf32>
    %90 = vector.shape_cast %86 : vector<128xf32> to vector<1x128xf32>
    tpu.vector_store %arg5[%87, %c0_16], %90 {strides = array<i32>} : memref<8x128xf32, #tpu.memory_space<vmem>>, vector<1x128xf32>,
    %91 = arith.addi %0, %c4_i32 : i32
    %92 = arith.index_cast %91 : i32 to index
    %93 = memref.load %arg2[%92] : memref<8xi32, #tpu.memory_space<smem>>
    %94 = arith.index_cast %93 : i32 to index
    %c0_17 = arith.constant 0 : index
    %95 = vector.load %arg3[%94, %c0_17] : memref<64x128xf32, #tpu.memory_space<vmem>>, vector<1x128xf32>
    %96 = vector.shape_cast %95 : vector<1x128xf32> to vector<128xf32>
    %97 = arith.index_cast %c4_i32 : i32 to index
    %c0_18 = arith.constant 0 : index
    %98 = vector.load %arg6[%97, %c0_18] : memref<8x128xf32, #tpu.memory_space<vmem>>, vector<1x128xf32>
    %99 = vector.shape_cast %98 : vector<1x128xf32> to vector<128xf32>
    %100 = vector.shape_cast %96 : vector<128xf32> to vector<1x128xf32>
    tpu.vector_store %arg6[%97, %c0_18], %100 {strides = array<i32>} : memref<8x128xf32, #tpu.memory_space<vmem>>, vector<1x128xf32>,
    %c5_i32 = arith.constant 5 : i32
    %101 = arith.addi %0, %c5_i32 : i32
    %102 = arith.index_cast %101 : i32 to index
    %103 = memref.load %arg1[%102] : memref<8xi32, #tpu.memory_space<smem>>
    %104 = arith.index_cast %103 : i32 to index
    %c0_19 = arith.constant 0 : index
    %105 = vector.load %arg3[%104, %c0_19] : memref<64x128xf32, #tpu.memory_space<vmem>>, vector<1x128xf32>
    %106 = vector.shape_cast %105 : vector<1x128xf32> to vector<128xf32>
    %107 = arith.index_cast %c5_i32 : i32 to index
    %c0_20 = arith.constant 0 : index
    %108 = vector.load %arg5[%107, %c0_20] : memref<8x128xf32, #tpu.memory_space<vmem>>, vector<1x128xf32>
    %109 = vector.shape_cast %108 : vector<1x128xf32> to vector<128xf32>
    %110 = vector.shape_cast %106 : vector<128xf32> to vector<1x128xf32>
    tpu.vector_store %arg5[%107, %c0_20], %110 {strides = array<i32>} : memref<8x128xf32, #tpu.memory_space<vmem>>, vector<1x128xf32>,
    %111 = arith.addi %0, %c5_i32 : i32
    %112 = arith.index_cast %111 : i32 to index
    %113 = memref.load %arg2[%112] : memref<8xi32, #tpu.memory_space<smem>>
    %114 = arith.index_cast %113 : i32 to index
    %c0_21 = arith.constant 0 : index
    %115 = vector.load %arg3[%114, %c0_21] : memref<64x128xf32, #tpu.memory_space<vmem>>, vector<1x128xf32>
    %116 = vector.shape_cast %115 : vector<1x128xf32> to vector<128xf32>
    %117 = arith.index_cast %c5_i32 : i32 to index
    %c0_22 = arith.constant 0 : index
    %118 = vector.load %arg6[%117, %c0_22] : memref<8x128xf32, #tpu.memory_space<vmem>>, vector<1x128xf32>
    %119 = vector.shape_cast %118 : vector<1x128xf32> to vector<128xf32>
    %120 = vector.shape_cast %116 : vector<128xf32> to vector<1x128xf32>
    tpu.vector_store %arg6[%117, %c0_22], %120 {strides = array<i32>} : memref<8x128xf32, #tpu.memory_space<vmem>>, vector<1x128xf32>,
    %c6_i32 = arith.constant 6 : i32
    %121 = arith.addi %0, %c6_i32 : i32
    %122 = arith.index_cast %121 : i32 to index
    %123 = memref.load %arg1[%122] : memref<8xi32, #tpu.memory_space<smem>>
    %124 = arith.index_cast %123 : i32 to index
    %c0_23 = arith.constant 0 : index
    %125 = vector.load %arg3[%124, %c0_23] : memref<64x128xf32, #tpu.memory_space<vmem>>, vector<1x128xf32>
    %126 = vector.shape_cast %125 : vector<1x128xf32> to vector<128xf32>
    %127 = arith.index_cast %c6_i32 : i32 to index
    %c0_24 = arith.constant 0 : index
    %128 = vector.load %arg5[%127, %c0_24] : memref<8x128xf32, #tpu.memory_space<vmem>>, vector<1x128xf32>
    %129 = vector.shape_cast %128 : vector<1x128xf32> to vector<128xf32>
    %130 = vector.shape_cast %126 : vector<128xf32> to vector<1x128xf32>
    tpu.vector_store %arg5[%127, %c0_24], %130 {strides = array<i32>} : memref<8x128xf32, #tpu.memory_space<vmem>>, vector<1x128xf32>,
    %131 = arith.addi %0, %c6_i32 : i32
    %132 = arith.index_cast %131 : i32 to index
    %133 = memref.load %arg2[%132] : memref<8xi32, #tpu.memory_space<smem>>
    %134 = arith.index_cast %133 : i32 to index
    %c0_25 = arith.constant 0 : index
    %135 = vector.load %arg3[%134, %c0_25] : memref<64x128xf32, #tpu.memory_space<vmem>>, vector<1x128xf32>
    %136 = vector.shape_cast %135 : vector<1x128xf32> to vector<128xf32>
    %137 = arith.index_cast %c6_i32 : i32 to index
    %c0_26 = arith.constant 0 : index
    %138 = vector.load %arg6[%137, %c0_26] : memref<8x128xf32, #tpu.memory_space<vmem>>, vector<1x128xf32>
    %139 = vector.shape_cast %138 : vector<1x128xf32> to vector<128xf32>
    %140 = vector.shape_cast %136 : vector<128xf32> to vector<1x128xf32>
    tpu.vector_store %arg6[%137, %c0_26], %140 {strides = array<i32>} : memref<8x128xf32, #tpu.memory_space<vmem>>, vector<1x128xf32>,
    %c7_i32 = arith.constant 7 : i32
    %141 = arith.addi %0, %c7_i32 : i32
    %142 = arith.index_cast %141 : i32 to index
    %143 = memref.load %arg1[%142] : memref<8xi32, #tpu.memory_space<smem>>
    %144 = arith.index_cast %143 : i32 to index
    %c0_27 = arith.constant 0 : index
    %145 = vector.load %arg3[%144, %c0_27] : memref<64x128xf32, #tpu.memory_space<vmem>>, vector<1x128xf32>
    %146 = vector.shape_cast %145 : vector<1x128xf32> to vector<128xf32>
    %147 = arith.index_cast %c7_i32 : i32 to index
    %c0_28 = arith.constant 0 : index
    %148 = vector.load %arg5[%147, %c0_28] : memref<8x128xf32, #tpu.memory_space<vmem>>, vector<1x128xf32>
    %149 = vector.shape_cast %148 : vector<1x128xf32> to vector<128xf32>
    %150 = vector.shape_cast %146 : vector<128xf32> to vector<1x128xf32>
    tpu.vector_store %arg5[%147, %c0_28], %150 {strides = array<i32>} : memref<8x128xf32, #tpu.memory_space<vmem>>, vector<1x128xf32>,
    %151 = arith.addi %0, %c7_i32 : i32
    %152 = arith.index_cast %151 : i32 to index
    %153 = memref.load %arg2[%152] : memref<8xi32, #tpu.memory_space<smem>>
    %154 = arith.index_cast %153 : i32 to index
    %c0_29 = arith.constant 0 : index
    %155 = vector.load %arg3[%154, %c0_29] : memref<64x128xf32, #tpu.memory_space<vmem>>, vector<1x128xf32>
    %156 = vector.shape_cast %155 : vector<1x128xf32> to vector<128xf32>
    %157 = arith.index_cast %c7_i32 : i32 to index
    %c0_30 = arith.constant 0 : index
    %158 = vector.load %arg6[%157, %c0_30] : memref<8x128xf32, #tpu.memory_space<vmem>>, vector<1x128xf32>
    %159 = vector.shape_cast %158 : vector<1x128xf32> to vector<128xf32>
    %160 = vector.shape_cast %156 : vector<128xf32> to vector<1x128xf32>
    tpu.vector_store %arg6[%157, %c0_30], %160 {strides = array<i32>} : memref<8x128xf32, #tpu.memory_space<vmem>>, vector<1x128xf32>,
    %c8_i32_31 = arith.constant 8 : i32
    %c0_32 = arith.constant 0 : index
    %c0_33 = arith.constant 0 : index
    %161 = vector.load %arg5[%c0_32, %c0_33] : memref<8x128xf32, #tpu.memory_space<vmem>>, vector<8x128xf32>
    %c0_34 = arith.constant 0 : index
    %c0_35 = arith.constant 0 : index
    %162 = vector.load %arg6[%c0_34, %c0_35] : memref<8x128xf32, #tpu.memory_space<vmem>>, vector<8x128xf32>
    %163 = arith.mulf %161, %162 : vector<8x128xf32>
    %cst = arith.constant dense<0.000000e+00> : vector<8xf32>
    %164 = vector.multi_reduction <add>, %163, %cst [1] : vector<8x128xf32> to vector<8xf32>
    %165 = vector.shape_cast %164 : vector<8xf32> to vector<1x8xf32>
    %c0_36 = arith.constant 0 : index
    %c0_37 = arith.constant 0 : index
    %166 = vector.load %arg4[%c0_36, %c0_37] : memref<1x8xf32, #tpu.memory_space<vmem>>, vector<1x8xf32>
    tpu.vector_store %arg4[%c0_36, %c0_37], %165 {strides = array<i32>} : memref<1x8xf32, #tpu.memory_space<vmem>>, vector<1x8xf32>,
    return
  }
  func.func @transform_0(%arg0: i32, %arg1: memref<8xi32, #tpu.memory_space<smem>>, %arg2: memref<8xi32, #tpu.memory_space<smem>>) -> (i32, i32) {
    %c0_i32 = arith.constant 0 : i32
    %c0_i32_0 = arith.constant 0 : i32
    %c0_i32_1 = arith.constant 0 : i32
    return %c0_i32, %c0_i32_0 : i32, i32
  }
  func.func @transform_1(%arg0: i32, %arg1: memref<8xi32, #tpu.memory_space<smem>>, %arg2: memref<8xi32, #tpu.memory_space<smem>>) -> (i32, i32) {
    %c0_i32 = arith.constant 0 : i32
    %c0_i32_0 = arith.constant 0 : i32
    return %arg0, %c0_i32 : i32, i32
  }
}

</mosaic_0001>

<llo_original>
// kernel: tpu_custom_call.1
$region0: #{tpu_custom_call.1}
  #allocation0 [shape = 'u32[]', space=smem, size = 0x4, offset = 0x4, fixed_abs, tag = 'smem constant byte address 0x4 - core index']
  #allocation1 [shape = 'u32[144,128]{1,0:T(1,128)}', space=vmem, size = 0x12000, scoped, tag = 'internal scratch']
  #allocation2 [shape = 'f32[8,128]{1,0:T(8,128)}', space=vmem, size = 0x1000, scoped, tag = 'scratch operand']
  #allocation3 [shape = 'f32[8,128]{1,0:T(8,128)}', space=vmem, size = 0x1000, scoped, tag = 'scratch operand']
  #allocation4 [shape = 's32[1]{0}', space=sflag, size = 0x4, scoped, tag = 'scoped memory for tpu_custom_call.1']
  #allocation5 [shape = 'u8[512]{0}', space=smem, size = 0x200, scoped, tag = 'prefetched SMEM operand 0']
  #allocation6 [shape = 'u8[512]{0}', space=smem, size = 0x200, scoped, tag = 'prefetched SMEM operand 1']
  %s0 = inlined_call_operand.hbm [shape: s32[8], index: 0, kind: input, shape index: {}]
  %s1 = inlined_call_operand.vmem [shape: s32[8], index: 1, kind: input, shape index: {}]
  %s2 = inlined_call_operand.hbm [shape: f32[64,128], index: 2, kind: input, shape index: {}]
  %s3 = inlined_call_operand.hbm [shape: f32[1,8], index: 3, kind: output, shape index: {}]
  %s4 = sld [smem:[#allocation0]]
  $region18: #{tpu_custom_call.1} parent=0
    _
  %s6 = ssub.s32 1, %s4
  %s7 = scalar_select 0, %s6, %s4
  %9 = dma.hbm_to_smem %s0, 16, [#allocation5], [#allocation4]
  %s10 = sshll.u32 %s1, 4
  %s11 = int_to_ptr.vmem [resolvable:$true] %s10
  %13 = dma.vmem_to_smem %s11, 16, [#allocation6], [#allocation4]
  %14 = dma.done [#allocation4], 32
  %15 = sfence
  $region1: #{tpu_custom_call.1} parent=0
    #allocation7 [shape = 'u8[32768]{0}', space=vmem, size = 0x8000, scoped, tag = 'input window, operand 2, single buffered']
    #allocation8 [shape = 's32[1]{0}', space=sflag, size = 0x4, scoped, tag = 'scoped memory for tpu_custom_call.1']
    #allocation9 [shape = 's32[1]{0}', space=sflag, size = 0x4, scoped, tag = 'scoped memory for tpu_custom_call.1']
    #allocation10 [shape = 'u8[512]{0}', space=vmem, size = 0x400, scoped, tag = 'output window, operand 0, single buffered']
    %16 = vsyncpa [#allocation8], 0
    %17 = vsyncpa [#allocation9], 0
    // Predicated region
    $region2: #{tpu_custom_call.1} parent=1 // pred_check
      _
    $region3: #{tpu_custom_call.1} parent=1 // pred_check_branch
      %19 = sbr.rel (0) target = $region5
    $region4: #{tpu_custom_call.1} parent=1 // pred_region
      %s21 = ssub.s32 1024, 1024
      %22 = vsyncadd [#allocation8], %s21
      %s23 = sshll.u32 [#allocation7], 4
      %s24 = int_to_ptr.vmem [resolvable:$true] %s23
      %29 = dma.hbm_to_vmem [thread:$0]  %s2, 1024, %s24, [#allocation8], 128, 128, 8
    $region5: #{tpu_custom_call.1} parent=1 // pred_fallthru
      _
    // Predicated region
    $region6: #{tpu_custom_call.1} parent=1 // pred_check
      _
    $region7: #{tpu_custom_call.1} parent=1 // pred_check_branch
      %31 = sbr.rel (0) target = $region9
    $region8: #{tpu_custom_call.1} parent=1 // pred_region
      %32 = dma.done [#allocation8], 1024
    $region9: #{tpu_custom_call.1} parent=1 // pred_fallthru
      _
    %s33 = smul.u32 0, 8
    %s34 = sld [smem:[#allocation5 + %s33]]
    %s35 = scalar_lea.vmem [#allocation7], %s34
    %v36 = vld [vmem:[%s35] sm:$0x1]
    %37 = vst [vmem:[#allocation2] sm:$0x1] %v36
    %s38 = sld [smem:[#allocation6 + %s33]]
    %s39 = scalar_lea.vmem [#allocation7], %s38
    %v40 = vld [vmem:[%s39] sm:$0x1]
    %41 = vst [vmem:[#allocation3] sm:$0x1] %v40
    %s42 = sadd.s32 %s33, 1
    %s43 = sld [smem:[#allocation5 + %s42]]
    %s44 = scalar_lea.vmem [#allocation7], %s43
    %v45 = vld [vmem:[%s44] sm:$0x1]
    %46 = vst [vmem:[#allocation2 + $0x1] sm:$0x1] %v45
    %s47 = sld [smem:[#allocation6 + %s42]]
    %s48 = scalar_lea.vmem [#allocation7], %s47
    %v49 = vld [vmem:[%s48] sm:$0x1]
    %50 = vst [vmem:[#allocation3 + $0x1] sm:$0x1] %v49
    %s51 = sadd.s32 %s33, 2
    %s52 = sld [smem:[#allocation5 + %s51]]
    %s53 = scalar_lea.vmem [#allocation7], %s52
    %v54 = vld [vmem:[%s53] sm:$0x1]
    %55 = vst [vmem:[#allocation2 + $0x2] sm:$0x1] %v54
    %s56 = sld [smem:[#allocation6 + %s51]]
    %s57 = scalar_lea.vmem [#allocation7], %s56
    %v58 = vld [vmem:[%s57] sm:$0x1]
    %59 = vst [vmem:[#allocation3 + $0x2] sm:$0x1] %v58
    %s60 = sadd.s32 %s33, 3
    %s61 = sld [smem:[#allocation5 + %s60]]
    %s62 = scalar_lea.vmem [#allocation7], %s61
    %v63 = vld [vmem:[%s62] sm:$0x1]
    %64 = vst [vmem:[#allocation2 + $0x3] sm:$0x1] %v63
    %s65 = sld [smem:[#allocation6 + %s60]]
    %s66 = scalar_lea.vmem [#allocation7], %s65
    %v67 = vld [vmem:[%s66] sm:$0x1]
    %68 = vst [vmem:[#allocation3 + $0x3] sm:$0x1] %v67
    %s69 = sadd.s32 %s33, 4
    %s70 = sld [smem:[#allocation5 + %s69]]
    %s71 = scalar_lea.vmem [#allocation7], %s70
    %v72 = vld [vmem:[%s71] sm:$0x1]
    %73 = vst [vmem:[#allocation2 + $0x4] sm:$0x1] %v72
    %s74 = sld [smem:[#allocation6 + %s69]]
    %s75 = scalar_lea.vmem [#allocation7], %s74
    %v76 = vld [vmem:[%s75] sm:$0x1]
    %77 = vst [vmem:[#allocation3 + $0x4] sm:$0x1] %v76
    %s78 = sadd.s32 %s33, 5
    %s79 = sld [smem:[#allocation5 + %s78]]
    %s80 = scalar_lea.vmem [#allocation7], %s79
    %v81 = vld [vmem:[%s80] sm:$0x1]
    %82 = vst [vmem:[#allocation2 + $0x5] sm:$0x1] %v81
    %s83 = sld [smem:[#allocation6 + %s78]]
    %s84 = scalar_lea.vmem [#allocation7], %s83
    %v85 = vld [vmem:[%s84] sm:$0x1]
    %86 = vst [vmem:[#allocation3 + $0x5] sm:$0x1] %v85
    %s87 = sadd.s32 %s33, 6
    %s88 = sld [smem:[#allocation5 + %s87]]
    %s89 = scalar_lea.vmem [#allocation7], %s88
    %v90 = vld [vmem:[%s89] sm:$0x1]
    %91 = vst [vmem:[#allocation2 + $0x6] sm:$0x1] %v90
    %s92 = sld [smem:[#allocation6 + %s87]]
    %s93 = scalar_lea.vmem [#allocation7], %s92
    %v94 = vld [vmem:[%s93] sm:$0x1]
    %95 = vst [vmem:[#allocation3 + $0x6] sm:$0x1] %v94
    %s96 = sadd.s32 %s33, 7
    %s97 = sld [smem:[#allocation5 + %s96]]
    %s98 = scalar_lea.vmem [#allocation7], %s97
    %v99 = vld [vmem:[%s98] sm:$0x1]
    %100 = vst [vmem:[#allocation2 + $0x7] sm:$0x1] %v99
    %s101 = sld [smem:[#allocation6 + %s96]]
    %s102 = scalar_lea.vmem [#allocation7], %s101
    %v103 = vld [vmem:[%s102] sm:$0x1]
    %104 = vst [vmem:[#allocation3 + $0x7] sm:$0x1] %v103
    %v105 = vld [vmem:[#allocation2] sm:$0xff]
    %v106 = vld [vmem:[#allocation3] sm:$0xff]
    %v107 = vmul.f32 %v105, %v106
    %108 = vadd.xlane.f32.xlu0 %v107
    %v109 = vpop.xlane.xlu0 %108
    %v111 = vlaneseq
    %v112 = vand.u32 %v111, 127
    %v113 = vlaneseq
    %v114 = vshrl.u32 %v113, 7
    %v115 = vsub.s32 %v112, %v114
    %v116 = vrot.slane %v109, %v115
    %vm118 = vcmask 57344
    %119 = vst.msk [vmem:[#allocation10] sm:$0x1] %vm118, %v116
    // Predicated region
    $region10: #{tpu_custom_call.1} parent=1 // pred_check
      _
    $region11: #{tpu_custom_call.1} parent=1 // pred_check_branch
      %121 = sbr.rel (0) target = $region13
    $region12: #{tpu_custom_call.1} parent=1 // pred_region
      %s123 = ssub.s32 16, 16
      %124 = vsyncadd [#allocation9], %s123
      %s126 = sshll.u32 [#allocation10], 4
      %s127 = int_to_ptr.vmem [resolvable:$true] %s126
      %129 = dma.vmem_to_hbm [thread:$0]  %s127, 16, %s3, [#allocation9]
    $region13: #{tpu_custom_call.1} parent=1 // pred_fallthru
      _
    // Predicated region
    $region14: #{tpu_custom_call.1} parent=1 // pred_check
      _
    $region15: #{tpu_custom_call.1} parent=1 // pred_check_branch
      %131 = sbr.rel (0) target = $region17
    $region16: #{tpu_custom_call.1} parent=1 // pred_region
      %132 = dma.done [#allocation9], 16
    $region17: #{tpu_custom_call.1} parent=1 // pred_fallthru
      _
    %133 = vsyncpa [#allocation8], 1
    %134 = vsyncpa [#allocation9], 1

</llo_original>
